<compile_context>
chip_gen: v5e
topology: v5e:2x2
jax: 0.10.0
libtpu: 0.0.40
codegen_flags: <defaults>
</compile_context>

<pallas_src>
import math
from functools import partial

import jax
import jax.numpy as jnp
from jax.experimental import pallas as pl
from jax.experimental.pallas import tpu as pltpu

F32 = jnp.float32
BF16 = jnp.bfloat16
LANE = 128  # lane-dense width for all activations / weight slabs

BASE_ACTS = ("relu", "relu", "tanh")
HEAD_ACTS = ("relu", "relu", "relu", "relu", "relu", "tanh")
N_BASE = len(BASE_ACTS)
N_TOTAL = N_BASE + len(HEAD_ACTS)


def _apply_act(h, act):
    if act == "relu":
        return jnp.maximum(h, 0.0)
    if act == "tanh":
        return jnp.tanh(h)
    raise ValueError(act)


# ----------------------------------------------------------------------------
# Fused kernel: base MLP (+ optional AntMazeActionHead), one batch tile / step
# ----------------------------------------------------------------------------
def _make_policy_kernel(act_dim, use_goal):
    assert act_dim + 2 <= LANE, "act_dim + 2 must fit in one 128-lane tile"

    def kernel(goal_ref, obs_ref, w_ref, b_ref, out_ref):
        biases = b_ref[...]          # (N_TOTAL, LANE) f32, VMEM-resident
        h = obs_ref[...]             # (TILE_B, LANE) f32; dr/dh already in lanes
                                     # obs_dim, obs_dim+1 (done in the wrapper)

        # base_model MLP -- bf16 weights, f32 accumulation. Padded weight
        # rows/cols and padded bias lanes are exactly zero, so padded lanes of
        # h stay exactly zero through ReLU / Tanh.
        for i, act in enumerate(BASE_ACTS):
            h = jnp.dot(h.astype(BF16), w_ref[i], preferred_element_type=F32)
            h = _apply_act(h + biases[i][None, :], act)

        if use_goal:
            # torch.cat((base_output, goal_tensor), dim=1): lanes >= act_dim of
            # the padded tanh output are exactly zero, so injecting the goal
            # scalars at lanes act_dim, act_dim+1 is equivalent.
            lane = jax.lax.broadcasted_iota(jnp.int32, (1, LANE), 1)
            h = h + jnp.where(lane == act_dim, goal_ref[0], 0.0)
            h = h + jnp.where(lane == act_dim + 1, goal_ref[1], 0.0)
            for j, act in enumerate(HEAD_ACTS):
                i = N_BASE + j
                h = jnp.dot(h.astype(BF16), w_ref[i], preferred_element_type=F32)
                h = _apply_act(h + biases[i][None, :], act)

        out_ref[...] = h.astype(out_ref.dtype)

    return kernel


# ----------------------------------------------------------------------------
# Fully jit-fused forward (input packing + pallas_call + output slice)
# ----------------------------------------------------------------------------
@partial(jax.jit, static_argnames=("obs_dim", "act_dim", "use_goal"))
def _forward_impl(all_w, all_b, obs, dr, dh, goal, *, obs_dim, act_dim, use_goal):
    assert obs_dim + 2 <= LANE, "obs_dim + 2 must fit in one 128-lane tile"
    B = obs.shape[0]
    b8 = -(-B // 8) * 8                 # round batch up to a sublane multiple
    tile_b = min(b8, 128)               # batch tile per grid step
    bp = -(-B // tile_b) * tile_b       # padded batch

    # In-jit equivalent of np.concatenate((obs, [dr, dh])) + zero lane padding.
    x = jnp.zeros((bp, LANE), F32)
    x = x.at[:B, :obs_dim].set(obs)
    x = x.at[:B, obs_dim].set(jnp.broadcast_to(jnp.asarray(dr, F32), (B,)))
    x = x.at[:B, obs_dim + 1].set(jnp.broadcast_to(jnp.asarray(dh, F32), (B,)))

    n_w_layers = N_TOTAL if use_goal else N_BASE   # use_goal=False never DMAs head weights

    out = pl.pallas_call(
        _make_policy_kernel(act_dim, use_goal),
        out_shape=jax.ShapeDtypeStruct((bp, LANE), F32),
        grid=(bp // tile_b,),
        in_specs=[
            pl.BlockSpec(memory_space=pltpu.MemorySpace.SMEM),            # goal (2,)
            pl.BlockSpec((tile_b, LANE), lambda b: (b, 0)),               # obs tile
            pl.BlockSpec((n_w_layers, LANE, LANE), lambda b: (0, 0, 0)),  # weights, resident
            pl.BlockSpec((N_TOTAL, LANE), lambda b: (0, 0)),              # biases, resident
        ],
        out_specs=pl.BlockSpec((tile_b, LANE), lambda b: (b, 0)),
        compiler_params=pltpu.CompilerParams(
            dimension_semantics=("parallel",)),
    )(goal, x, all_w, all_b)

    return out[:B, :act_dim]


def ant_nn_policy_forward(params, obs, dr, dh, goal_vector, use_goal=True):
    """Mirrors AntNNPretrainedMazePolicy.forward (obs may be (obs_dim,) or (B, obs_dim))."""
    obs_dim, act_dim = params["obs_dim"], params["act_dim"]
    obs = jnp.asarray(obs, F32)
    if obs.ndim == 1:
        obs = obs[None, :]
    if use_goal:
        if goal_vector is None:
            raise ValueError("goal_vector must be provided when use_goal=True")
        goal = jnp.asarray(goal_vector, F32).reshape(2)
    else:
        goal = jnp.zeros((2,), F32)
    return _forward_impl(params["all_w"], params["all_b"], obs,
                         jnp.asarray(dr, F32), jnp.asarray(dh, F32), goal,
                         obs_dim=obs_dim, act_dim=act_dim, use_goal=use_goal)


# ----------------------------------------------------------------------------
# Deterministic parameter construction (+ lane-dense bf16 packing)
# ----------------------------------------------------------------------------
def _linear(key, fan_in, fan_out):
    kw, kb = jax.random.split(key)
    bound = 1.0 / math.sqrt(fan_in)
    w = jax.random.uniform(kw, (fan_in, fan_out), F32, -bound, bound)
    b = jax.random.uniform(kb, (fan_out,), F32, -bound, bound)
    return w, b


def init_params(key, obs_dim, act_dim, hidden_size=64):
    assert obs_dim + 2 <= LANE and act_dim + 2 <= LANE
    keys = iter(jax.random.split(key, 16))
    # Synthetic base_model (externally injected in the torch code).
    base_raw = [
        _linear(next(keys), obs_dim + 2, hidden_size),
        _linear(next(keys), hidden_size, hidden_size),
        _linear(next(keys), hidden_size, act_dim),
    ]
    # AntMazeActionHead(hidden_size, act_dim): exact architecture from the module.
    head_raw = [
        _linear(next(keys), act_dim + 2, hidden_size),
        _linear(next(keys), hidden_size, hidden_size),
        _linear(next(keys), hidden_size, hidden_size),
        _linear(next(keys), hidden_size, hidden_size),
        _linear(next(keys), hidden_size, hidden_size // 2),
        _linear(next(keys), hidden_size // 2, act_dim),
    ]
    # One (9,128,128) bf16 weight slab + one (9,128) f32 bias tile; zero padding
    # (the goal/dr/dh lane-injection relies on the padding being exactly zero).
    ws, bs = [], []
    for w, b in base_raw + head_raw:
        ws.append(jnp.zeros((LANE, LANE), BF16)
                  .at[: w.shape[0], : w.shape[1]].set(w.astype(BF16)))
        bs.append(jnp.zeros((LANE,), F32).at[: b.shape[0]].set(b))
    return dict(obs_dim=obs_dim, act_dim=act_dim,
                base_raw=base_raw, head_raw=head_raw,
                all_w=jnp.stack(ws), all_b=jnp.stack(bs))


# ----------------------------------------------------------------------------
# Pure-JAX references (unpadded math) for correctness checks
# ----------------------------------------------------------------------------
def _ref_mlp(x, layers, acts, quantized):
    for (w, b), a in zip(layers, acts):
        if quantized:  # mirrors the kernel arithmetic: bf16 operands, f32 accum
            y = jnp.dot(x.astype(BF16), w.astype(BF16), preferred_element_type=F32)
        else:
            y = jnp.dot(x, w)
        x = _apply_act(y + b[None, :], a)
    return x


def _ref_forward(params, obs, dr, dh, goal_vector, use_goal=True, quantized=True):
    obs = jnp.asarray(obs, F32)
    if obs.ndim == 1:
        obs = obs[None, :]
    B = obs.shape[0]
    x = jnp.concatenate(
        [obs, jnp.full((B, 1), dr, F32), jnp.full((B, 1), dh, F32)], axis=1)
    base = _ref_mlp(x, params["base_raw"], BASE_ACTS, quantized)
    if not use_goal:
        return base
    g = jnp.broadcast_to(jnp.asarray(goal_vector, F32).reshape(1, 2), (B, 2))
    return _ref_mlp(jnp.concatenate([base, g], axis=1),
                    params["head_raw"], HEAD_ACTS, quantized)


# ----------------------------------------------------------------------------
if __name__ == "__main__":
    OBS_DIM = 27        # Ant observation size
    ACT_DIM = 8
    HIDDEN = 64
    BATCH = 16

    root = jax.random.PRNGKey(0)
    kp, ko, kb, kg = jax.random.split(root, 4)
    params = init_params(kp, OBS_DIM, ACT_DIM, HIDDEN)

    obs = jax.random.normal(ko, (OBS_DIM,), F32)
    obs_batch = jax.random.normal(kb, (BATCH, OBS_DIM), F32)
    goal_vector = jax.random.normal(kg, (2,), F32)
    dr, dh = 0.5, 0.25

    # single-sample, with goal (adjusted head) and without goal (base only)
    act1 = jax.block_until_ready(
        ant_nn_policy_forward(params, obs, dr, dh, goal_vector, use_goal=True))
    base1 = jax.block_until_ready(
        ant_nn_policy_forward(params, obs, dr, dh, goal_vector, use_goal=False))
    # batched path (weights stay VMEM-resident across batch tiles)
    actB = jax.block_until_ready(
        ant_nn_policy_forward(params, obs_batch, dr, dh, goal_vector, use_goal=True))

    assert act1.shape == (1, ACT_DIM)
    assert base1.shape == (1, ACT_DIM)
    assert actB.shape == (BATCH, ACT_DIM)

    # exact-semantics check vs. a reference using the same bf16 weight storage
    ref_act1 = _ref_forward(params, obs, dr, dh, goal_vector, use_goal=True)
    ref_base1 = _ref_forward(params, obs, dr, dh, goal_vector, use_goal=False)
    ref_actB = _ref_forward(params, obs_batch, dr, dh, goal_vector, use_goal=True)
    assert jnp.allclose(act1, ref_act1, atol=1e-3, rtol=1e-3)
    assert jnp.allclose(base1, ref_base1, atol=1e-3, rtol=1e-3)
    assert jnp.allclose(actB, ref_actB, atol=1e-3, rtol=1e-3)

    # loose sanity check vs. the original full-f32 math (bf16 weight quantization
    # introduces only small error on this tanh-bounded output)
    ref_f32 = _ref_forward(params, obs, dr, dh, goal_vector, use_goal=True,
                           quantized=False)
    assert jnp.allclose(act1, ref_f32, atol=2e-2, rtol=2e-2)

    print("KERNEL_OK")
</pallas_src>

<mosaic_0001>
module attributes {stable_mosaic.version = 11 : i64} {
  func.func @kernel(%arg0: i32, %arg1: memref<2xf32, #tpu.memory_space<smem>>, %arg2: memref<8x128xf32, #tpu.memory_space<vmem>>, %arg3: memref<9x128x128xbf16, #tpu.memory_space<vmem>>, %arg4: memref<9x128xf32, #tpu.memory_space<vmem>>, %arg5: memref<8x128xf32, #tpu.memory_space<vmem>>) attributes {dimension_semantics = [#tpu.dimension_semantics<parallel>], iteration_bounds = array<i64: 1>, scalar_prefetch = 0 : i64, scratch_operands = 0 : i64, tpu.core_type = #tpu.core_type<tc>, window_params = [{transform_indices = @transform_0, window_bounds = array<i64: 2>}, {transform_indices = @transform_1, window_bounds = array<i64: 8, 128>}, {pipeline_mode = #tpu.pipeline_mode<synchronous>, transform_indices = @transform_2, window_bounds = array<i64: 9, 128, 128>}, {pipeline_mode = #tpu.pipeline_mode<synchronous>, transform_indices = @transform_3, window_bounds = array<i64: 9, 128>}, {transform_indices = @transform_4, window_bounds = array<i64: 8, 128>}]} {
    %c0 = arith.constant 0 : index
    %c0_0 = arith.constant 0 : index
    %0 = vector.load %arg4[%c0, %c0_0] : memref<9x128xf32, #tpu.memory_space<vmem>>, vector<9x128xf32>
    %c0_1 = arith.constant 0 : index
    %c0_2 = arith.constant 0 : index
    %1 = vector.load %arg2[%c0_1, %c0_2] : memref<8x128xf32, #tpu.memory_space<vmem>>, vector<8x128xf32>
    %2 = arith.truncf %1 : vector<8x128xf32> to vector<8x128xbf16>
    %c0_3 = arith.constant 0 : index
    %c0_4 = arith.constant 0 : index
    %c0_5 = arith.constant 0 : index
    %3 = vector.load %arg3[%c0_3, %c0_4, %c0_5] : memref<9x128x128xbf16, #tpu.memory_space<vmem>>, vector<1x128x128xbf16>
    %4 = vector.shape_cast %3 : vector<1x128x128xbf16> to vector<128x128xbf16>
    %cst = arith.constant dense<0.000000e+00> : vector<8x128xf32>
    %5 = tpu.matmul %2, %4, %cst {dimension_numbers = #tpu.dot_dimension_numbers<[1], [0], [0], [1], [0, 0, 1, 1], [], []>} : vector<8x128xbf16>, vector<128x128xbf16>, vector<8x128xf32> -> vector<8x128xf32>
    %6 = vector.extract_strided_slice %0 {offsets = [0, 0], sizes = [1, 128], strides = [1, 1]} : vector<9x128xf32> to vector<1x128xf32>
    %7 = vector.shape_cast %6 : vector<1x128xf32> to vector<128xf32>
    %8 = vector.shape_cast %7 : vector<128xf32> to vector<1x128xf32>
    %9 = vector.broadcast %8 : vector<1x128xf32> to vector<8x128xf32>
    %10 = arith.addf %5, %9 : vector<8x128xf32>
    %cst_6 = arith.constant 0.000000e+00 : f32
    %11 = vector.broadcast %cst_6 : f32 to vector<8x128xf32>
    %12 = arith.maximumf %10, %11 : vector<8x128xf32>
    %13 = arith.truncf %12 : vector<8x128xf32> to vector<8x128xbf16>
    %c1 = arith.constant 1 : index
    %c0_7 = arith.constant 0 : index
    %c0_8 = arith.constant 0 : index
    %14 = vector.load %arg3[%c1, %c0_7, %c0_8] : memref<9x128x128xbf16, #tpu.memory_space<vmem>>, vector<1x128x128xbf16>
    %15 = vector.shape_cast %14 : vector<1x128x128xbf16> to vector<128x128xbf16>
    %cst_9 = arith.constant dense<0.000000e+00> : vector<8x128xf32>
    %16 = tpu.matmul %13, %15, %cst_9 {dimension_numbers = #tpu.dot_dimension_numbers<[1], [0], [0], [1], [0, 0, 1, 1], [], []>} : vector<8x128xbf16>, vector<128x128xbf16>, vector<8x128xf32> -> vector<8x128xf32>
    %17 = vector.extract_strided_slice %0 {offsets = [1, 0], sizes = [1, 128], strides = [1, 1]} : vector<9x128xf32> to vector<1x128xf32>
    %18 = vector.shape_cast %17 : vector<1x128xf32> to vector<128xf32>
    %19 = vector.shape_cast %18 : vector<128xf32> to vector<1x128xf32>
    %20 = vector.broadcast %19 : vector<1x128xf32> to vector<8x128xf32>
    %21 = arith.addf %16, %20 : vector<8x128xf32>
    %cst_10 = arith.constant 0.000000e+00 : f32
    %22 = vector.broadcast %cst_10 : f32 to vector<8x128xf32>
    %23 = arith.maximumf %21, %22 : vector<8x128xf32>
    %24 = arith.truncf %23 : vector<8x128xf32> to vector<8x128xbf16>
    %c2 = arith.constant 2 : index
    %c0_11 = arith.constant 0 : index
    %c0_12 = arith.constant 0 : index
    %25 = vector.load %arg3[%c2, %c0_11, %c0_12] : memref<9x128x128xbf16, #tpu.memory_space<vmem>>, vector<1x128x128xbf16>
    %26 = vector.shape_cast %25 : vector<1x128x128xbf16> to vector<128x128xbf16>
    %cst_13 = arith.constant dense<0.000000e+00> : vector<8x128xf32>
    %27 = tpu.matmul %24, %26, %cst_13 {dimension_numbers = #tpu.dot_dimension_numbers<[1], [0], [0], [1], [0, 0, 1, 1], [], []>} : vector<8x128xbf16>, vector<128x128xbf16>, vector<8x128xf32> -> vector<8x128xf32>
    %28 = vector.extract_strided_slice %0 {offsets = [2, 0], sizes = [1, 128], strides = [1, 1]} : vector<9x128xf32> to vector<1x128xf32>
    %29 = vector.shape_cast %28 : vector<1x128xf32> to vector<128xf32>
    %30 = vector.shape_cast %29 : vector<128xf32> to vector<1x128xf32>
    %31 = vector.broadcast %30 : vector<1x128xf32> to vector<8x128xf32>
    %32 = arith.addf %27, %31 : vector<8x128xf32>
    %33 = math.tanh %32 : vector<8x128xf32>
    %34 = tpu.iota {dimensions = array<i32: 1>} : vector<1x128xi32>
    %c8_i32 = arith.constant 8 : i32
    %35 = vector.broadcast %c8_i32 : i32 to vector<1x128xi32>
    %36 = arith.cmpi eq, %34, %35 : vector<1x128xi32>
    %c0_14 = arith.constant 0 : index
    %37 = memref.load %arg1[%c0_14] : memref<2xf32, #tpu.memory_space<smem>>
    %cst_15 = arith.constant 0.000000e+00 : f32
    %38 = vector.broadcast %37 : f32 to vector<1x128xf32>
    %39 = vector.broadcast %cst_15 : f32 to vector<1x128xf32>
    %40 = arith.select %36, %38, %39 : vector<1x128xi1>, vector<1x128xf32>
    %41 = vector.broadcast %40 : vector<1x128xf32> to vector<8x128xf32>
    %42 = arith.addf %33, %41 : vector<8x128xf32>
    %c9_i32 = arith.constant 9 : i32
    %43 = vector.broadcast %c9_i32 : i32 to vector<1x128xi32>
    %44 = arith.cmpi eq, %34, %43 : vector<1x128xi32>
    %c1_16 = arith.constant 1 : index
    %45 = memref.load %arg1[%c1_16] : memref<2xf32, #tpu.memory_space<smem>>
    %cst_17 = arith.constant 0.000000e+00 : f32
    %46 = vector.broadcast %45 : f32 to vector<1x128xf32>
    %47 = vector.broadcast %cst_17 : f32 to vector<1x128xf32>
    %48 = arith.select %44, %46, %47 : vector<1x128xi1>, vector<1x128xf32>
    %49 = vector.broadcast %48 : vector<1x128xf32> to vector<8x128xf32>
    %50 = arith.addf %42, %49 : vector<8x128xf32>
    %51 = arith.truncf %50 : vector<8x128xf32> to vector<8x128xbf16>
    %c3 = arith.constant 3 : index
    %c0_18 = arith.constant 0 : index
    %c0_19 = arith.constant 0 : index
    %52 = vector.load %arg3[%c3, %c0_18, %c0_19] : memref<9x128x128xbf16, #tpu.memory_space<vmem>>, vector<1x128x128xbf16>
    %53 = vector.shape_cast %52 : vector<1x128x128xbf16> to vector<128x128xbf16>
    %cst_20 = arith.constant dense<0.000000e+00> : vector<8x128xf32>
    %54 = tpu.matmul %51, %53, %cst_20 {dimension_numbers = #tpu.dot_dimension_numbers<[1], [0], [0], [1], [0, 0, 1, 1], [], []>} : vector<8x128xbf16>, vector<128x128xbf16>, vector<8x128xf32> -> vector<8x128xf32>
    %55 = vector.extract_strided_slice %0 {offsets = [3, 0], sizes = [1, 128], strides = [1, 1]} : vector<9x128xf32> to vector<1x128xf32>
    %56 = vector.shape_cast %55 : vector<1x128xf32> to vector<128xf32>
    %57 = vector.shape_cast %56 : vector<128xf32> to vector<1x128xf32>
    %58 = vector.broadcast %57 : vector<1x128xf32> to vector<8x128xf32>
    %59 = arith.addf %54, %58 : vector<8x128xf32>
    %cst_21 = arith.constant 0.000000e+00 : f32
    %60 = vector.broadcast %cst_21 : f32 to vector<8x128xf32>
    %61 = arith.maximumf %59, %60 : vector<8x128xf32>
    %62 = arith.truncf %61 : vector<8x128xf32> to vector<8x128xbf16>
    %c4 = arith.constant 4 : index
    %c0_22 = arith.constant 0 : index
    %c0_23 = arith.constant 0 : index
    %63 = vector.load %arg3[%c4, %c0_22, %c0_23] : memref<9x128x128xbf16, #tpu.memory_space<vmem>>, vector<1x128x128xbf16>
    %64 = vector.shape_cast %63 : vector<1x128x128xbf16> to vector<128x128xbf16>
    %cst_24 = arith.constant dense<0.000000e+00> : vector<8x128xf32>
    %65 = tpu.matmul %62, %64, %cst_24 {dimension_numbers = #tpu.dot_dimension_numbers<[1], [0], [0], [1], [0, 0, 1, 1], [], []>} : vector<8x128xbf16>, vector<128x128xbf16>, vector<8x128xf32> -> vector<8x128xf32>
    %66 = vector.extract_strided_slice %0 {offsets = [4, 0], sizes = [1, 128], strides = [1, 1]} : vector<9x128xf32> to vector<1x128xf32>
    %67 = vector.shape_cast %66 : vector<1x128xf32> to vector<128xf32>
    %68 = vector.shape_cast %67 : vector<128xf32> to vector<1x128xf32>
    %69 = vector.broadcast %68 : vector<1x128xf32> to vector<8x128xf32>
    %70 = arith.addf %65, %69 : vector<8x128xf32>
    %cst_25 = arith.constant 0.000000e+00 : f32
    %71 = vector.broadcast %cst_25 : f32 to vector<8x128xf32>
    %72 = arith.maximumf %70, %71 : vector<8x128xf32>
    %73 = arith.truncf %72 : vector<8x128xf32> to vector<8x128xbf16>
    %c5 = arith.constant 5 : index
    %c0_26 = arith.constant 0 : index
    %c0_27 = arith.constant 0 : index
    %74 = vector.load %arg3[%c5, %c0_26, %c0_27] : memref<9x128x128xbf16, #tpu.memory_space<vmem>>, vector<1x128x128xbf16>
    %75 = vector.shape_cast %74 : vector<1x128x128xbf16> to vector<128x128xbf16>
    %cst_28 = arith.constant dense<0.000000e+00> : vector<8x128xf32>
    %76 = tpu.matmul %73, %75, %cst_28 {dimension_numbers = #tpu.dot_dimension_numbers<[1], [0], [0], [1], [0, 0, 1, 1], [], []>} : vector<8x128xbf16>, vector<128x128xbf16>, vector<8x128xf32> -> vector<8x128xf32>
    %77 = vector.extract_strided_slice %0 {offsets = [5, 0], sizes = [1, 128], strides = [1, 1]} : vector<9x128xf32> to vector<1x128xf32>
    %78 = vector.shape_cast %77 : vector<1x128xf32> to vector<128xf32>
    %79 = vector.shape_cast %78 : vector<128xf32> to vector<1x128xf32>
    %80 = vector.broadcast %79 : vector<1x128xf32> to vector<8x128xf32>
    %81 = arith.addf %76, %80 : vector<8x128xf32>
    %cst_29 = arith.constant 0.000000e+00 : f32
    %82 = vector.broadcast %cst_29 : f32 to vector<8x128xf32>
    %83 = arith.maximumf %81, %82 : vector<8x128xf32>
    %84 = arith.truncf %83 : vector<8x128xf32> to vector<8x128xbf16>
    %c6 = arith.constant 6 : index
    %c0_30 = arith.constant 0 : index
    %c0_31 = arith.constant 0 : index
    %85 = vector.load %arg3[%c6, %c0_30, %c0_31] : memref<9x128x128xbf16, #tpu.memory_space<vmem>>, vector<1x128x128xbf16>
    %86 = vector.shape_cast %85 : vector<1x128x128xbf16> to vector<128x128xbf16>
    %cst_32 = arith.constant dense<0.000000e+00> : vector<8x128xf32>
    %87 = tpu.matmul %84, %86, %cst_32 {dimension_numbers = #tpu.dot_dimension_numbers<[1], [0], [0], [1], [0, 0, 1, 1], [], []>} : vector<8x128xbf16>, vector<128x128xbf16>, vector<8x128xf32> -> vector<8x128xf32>
    %88 = vector.extract_strided_slice %0 {offsets = [6, 0], sizes = [1, 128], strides = [1, 1]} : vector<9x128xf32> to vector<1x128xf32>
    %89 = vector.shape_cast %88 : vector<1x128xf32> to vector<128xf32>
    %90 = vector.shape_cast %89 : vector<128xf32> to vector<1x128xf32>
    %91 = vector.broadcast %90 : vector<1x128xf32> to vector<8x128xf32>
    %92 = arith.addf %87, %91 : vector<8x128xf32>
    %cst_33 = arith.constant 0.000000e+00 : f32
    %93 = vector.broadcast %cst_33 : f32 to vector<8x128xf32>
    %94 = arith.maximumf %92, %93 : vector<8x128xf32>
    %95 = arith.truncf %94 : vector<8x128xf32> to vector<8x128xbf16>
    %c7 = arith.constant 7 : index
    %c0_34 = arith.constant 0 : index
    %c0_35 = arith.constant 0 : index
    %96 = vector.load %arg3[%c7, %c0_34, %c0_35] : memref<9x128x128xbf16, #tpu.memory_space<vmem>>, vector<1x128x128xbf16>
    %97 = vector.shape_cast %96 : vector<1x128x128xbf16> to vector<128x128xbf16>
    %cst_36 = arith.constant dense<0.000000e+00> : vector<8x128xf32>
    %98 = tpu.matmul %95, %97, %cst_36 {dimension_numbers = #tpu.dot_dimension_numbers<[1], [0], [0], [1], [0, 0, 1, 1], [], []>} : vector<8x128xbf16>, vector<128x128xbf16>, vector<8x128xf32> -> vector<8x128xf32>
    %99 = vector.extract_strided_slice %0 {offsets = [7, 0], sizes = [1, 128], strides = [1, 1]} : vector<9x128xf32> to vector<1x128xf32>
    %100 = vector.shape_cast %99 : vector<1x128xf32> to vector<128xf32>
    %101 = vector.shape_cast %100 : vector<128xf32> to vector<1x128xf32>
    %102 = vector.broadcast %101 : vector<1x128xf32> to vector<8x128xf32>
    %103 = arith.addf %98, %102 : vector<8x128xf32>
    %cst_37 = arith.constant 0.000000e+00 : f32
    %104 = vector.broadcast %cst_37 : f32 to vector<8x128xf32>
    %105 = arith.maximumf %103, %104 : vector<8x128xf32>
    %106 = arith.truncf %105 : vector<8x128xf32> to vector<8x128xbf16>
    %c8 = arith.constant 8 : index
    %c0_38 = arith.constant 0 : index
    %c0_39 = arith.constant 0 : index
    %107 = vector.load %arg3[%c8, %c0_38, %c0_39] : memref<9x128x128xbf16, #tpu.memory_space<vmem>>, vector<1x128x128xbf16>
    %108 = vector.shape_cast %107 : vector<1x128x128xbf16> to vector<128x128xbf16>
    %cst_40 = arith.constant dense<0.000000e+00> : vector<8x128xf32>
    %109 = tpu.matmul %106, %108, %cst_40 {dimension_numbers = #tpu.dot_dimension_numbers<[1], [0], [0], [1], [0, 0, 1, 1], [], []>} : vector<8x128xbf16>, vector<128x128xbf16>, vector<8x128xf32> -> vector<8x128xf32>
    %110 = vector.extract_strided_slice %0 {offsets = [8, 0], sizes = [1, 128], strides = [1, 1]} : vector<9x128xf32> to vector<1x128xf32>
    %111 = vector.shape_cast %110 : vector<1x128xf32> to vector<128xf32>
    %112 = vector.shape_cast %111 : vector<128xf32> to vector<1x128xf32>
    %113 = vector.broadcast %112 : vector<1x128xf32> to vector<8x128xf32>
    %114 = arith.addf %109, %113 : vector<8x128xf32>
    %115 = math.tanh %114 : vector<8x128xf32>
    %c0_41 = arith.constant 0 : index
    %c0_42 = arith.constant 0 : index
    %116 = vector.load %arg5[%c0_41, %c0_42] : memref<8x128xf32, #tpu.memory_space<vmem>>, vector<8x128xf32>
    tpu.vector_store %arg5[%c0_41, %c0_42], %115 {strides = array<i32>} : memref<8x128xf32, #tpu.memory_space<vmem>>, vector<8x128xf32>,
    return
  }
  func.func @transform_0(%arg0: i32) -> i32 {
    %c0_i32 = arith.constant 0 : i32
    %c0_i32_0 = arith.constant 0 : i32
    return %c0_i32 : i32
  }
  func.func @transform_1(%arg0: i32) -> (i32, i32) {
    %c0_i32 = arith.constant 0 : i32
    %c0_i32_0 = arith.constant 0 : i32
    return %arg0, %c0_i32 : i32, i32
  }
  func.func @transform_2(%arg0: i32) -> (i32, i32, i32) {
    %c0_i32 = arith.constant 0 : i32
    %c0_i32_0 = arith.constant 0 : i32
    %c0_i32_1 = arith.constant 0 : i32
    %c0_i32_2 = arith.constant 0 : i32
    return %c0_i32, %c0_i32_0, %c0_i32_1 : i32, i32, i32
  }
  func.func @transform_3(%arg0: i32) -> (i32, i32) {
    %c0_i32 = arith.constant 0 : i32
    %c0_i32_0 = arith.constant 0 : i32
    %c0_i32_1 = arith.constant 0 : i32
    return %c0_i32, %c0_i32_0 : i32, i32
  }
  func.func @transform_4(%arg0: i32) -> (i32, i32) {
    %c0_i32 = arith.constant 0 : i32
    %c0_i32_0 = arith.constant 0 : i32
    return %arg0, %c0_i32 : i32, i32
  }
}

</mosaic_0001>

<llo_original>
// kernel: _forward_impl.1
$region0: #{_forward_impl.1}
  #allocation0 [shape = 'u32[]', space=smem, size = 0x4, offset = 0x4, fixed_abs, tag = 'smem constant byte address 0x4 - core index']
  #allocation1 [shape = 'u32[72,128]{1,0:T(1,128)}', space=vmem, size = 0x9000, scoped, tag = 'internal scratch']
  %s0 = inlined_call_operand.vmem [shape: f32[2], index: 0, kind: input, shape index: {}]
  %s1 = inlined_call_operand.vmem [shape: f32[8,128], index: 1, kind: input, shape index: {}]
  %s2 = inlined_call_operand.hbm [shape: bf16[9,128,128], index: 2, kind: input, shape index: {}]
  %s3 = inlined_call_operand.vmem [shape: f32[9,128], index: 3, kind: input, shape index: {}]
  %s4 = inlined_call_operand.vmem [shape: f32[8,128], index: 4, kind: output, shape index: {}]
  %s5 = sld [smem:[#allocation0]]
  $region34: #{_forward_impl.1} parent=0
    _
  %s7 = ssub.s32 1, %s5
  %s8 = scalar_select 0, %s7, %s5
  $region1: #{_forward_impl.1} parent=0
    #allocation2 [shape = 'u8[512]{0}', space=smem, size = 0x200, scoped, tag = 'input window, operand 0, single buffered']
    #allocation3 [shape = 's32[1]{0}', space=sflag, size = 0x4, scoped, tag = 'scoped memory for _forward_impl.1']
    #allocation4 [shape = 's32[1]{0}', space=sflag, size = 0x4, scoped, tag = 'scoped memory for _forward_impl.1']
    #allocation5 [shape = 'u8[294912]{0}', space=vmem, size = 0x48000, scoped, tag = 'input window, operand 2, single buffered']
    %9 = vsyncpa [#allocation4], 0
    %10 = vsyncpa [#allocation3], 0
    // Predicated region
    $region2: #{_forward_impl.1} parent=1 // pred_check
      _
    $region3: #{_forward_impl.1} parent=1 // pred_check_branch
      %12 = sbr.rel (0) target = $region5
    $region4: #{_forward_impl.1} parent=1 // pred_region
      %14 = vsyncadd [#allocation4], 0
      %s16 = sshll.u32 %s0, 4
      %s17 = int_to_ptr.vmem [resolvable:$true] %s16
      %19 = dma.vmem_to_smem %s17, 16, [#allocation2], [#allocation4]
    $region5: #{_forward_impl.1} parent=1 // pred_fallthru
      _
    // Predicated region
    $region6: #{_forward_impl.1} parent=1 // pred_check
      _
    $region7: #{_forward_impl.1} parent=1 // pred_check_branch
      %21 = sbr.rel (0) target = $region9
    $region8: #{_forward_impl.1} parent=1 // pred_region
      _
    $region9: #{_forward_impl.1} parent=1 // pred_fallthru
      _
    // Predicated region
    $region10: #{_forward_impl.1} parent=1 // pred_check
      _
    $region11: #{_forward_impl.1} parent=1 // pred_check_branch
      %23 = sbr.rel (0) target = $region13
    $region12: #{_forward_impl.1} parent=1 // pred_region
      %25 = vsyncadd [#allocation3], 0
      %s26 = sshll.u32 %s2, 4
      %s27 = int_to_ptr.hbm [resolvable:$true] %s26
      %s28 = sshll.u32 [#allocation5], 4
      %s29 = int_to_ptr.vmem [resolvable:$true] %s28
      %34 = dma.hbm_to_vmem [thread:$0]  %s27, 9216, %s29, [#allocation3], 64, 64, 4
    $region13: #{_forward_impl.1} parent=1 // pred_fallthru
      _
    // Predicated region
    $region14: #{_forward_impl.1} parent=1 // pred_check
      _
    $region15: #{_forward_impl.1} parent=1 // pred_check_branch
      %36 = sbr.rel (0) target = $region17
    $region16: #{_forward_impl.1} parent=1 // pred_region
      _
    $region17: #{_forward_impl.1} parent=1 // pred_fallthru
      _
    // Predicated region
    $region18: #{_forward_impl.1} parent=1 // pred_check
      _
    $region19: #{_forward_impl.1} parent=1 // pred_check_branch
      %38 = sbr.rel (0) target = $region21
    $region20: #{_forward_impl.1} parent=1 // pred_region
      %40 = dma.done [#allocation4], 16
    $region21: #{_forward_impl.1} parent=1 // pred_fallthru
      _
    // Predicated region
    $region22: #{_forward_impl.1} parent=1 // pred_check
      _
    $region23: #{_forward_impl.1} parent=1 // pred_check_branch
      %42 = sbr.rel (0) target = $region25
    $region24: #{_forward_impl.1} parent=1 // pred_region
      %44 = dma.done [#allocation3], 9216
    $region25: #{_forward_impl.1} parent=1 // pred_fallthru
      _
    %45 = sfence
    %v46 = vld [vmem:[%s3] sm:$0xff]
    %v47 = vld [vmem:[%s3 + $0x8] sm:$0x1]
    %v48 = vld [vmem:[%s1] sm:$0xff]
    %v49 = vpack.c.bf16 %v48, %v48
    %v50 = vld [vmem:[#allocation5] sm:$0xf]
    %v51 = vld [vmem:[#allocation5 + $0x4] sm:$0xf]
    %v52 = vld [vmem:[#allocation5 + $0x8] sm:$0xf]
    %v53 = vld [vmem:[#allocation5 + $0xc] sm:$0xf]
    %v54 = vld [vmem:[#allocation5 + $0x10] sm:$0xf]
    %v55 = vld [vmem:[#allocation5 + $0x14] sm:$0xf]
    %v56 = vld [vmem:[#allocation5 + $0x18] sm:$0xf]
    %v57 = vld [vmem:[#allocation5 + $0x1c] sm:$0xf]
    %v58 = vld [vmem:[#allocation5 + $0x20] sm:$0xf]
    %v59 = vld [vmem:[#allocation5 + $0x24] sm:$0xf]
    %v60 = vld [vmem:[#allocation5 + $0x28] sm:$0xf]
    %v61 = vld [vmem:[#allocation5 + $0x2c] sm:$0xf]
    %v62 = vld [vmem:[#allocation5 + $0x30] sm:$0xf]
    %v63 = vld [vmem:[#allocation5 + $0x34] sm:$0xf]
    %v64 = vld [vmem:[#allocation5 + $0x38] sm:$0xf]
    %v65 = vld [vmem:[#allocation5 + $0x3c] sm:$0xf]
    %v66 = vperm.slane %v46, 0
    %v83 = vunpack.c.l.b16 %v50
    %v84 = vunpack.c.l.b16 %v51
    %v85 = vunpack.c.l.b16 %v52
    %v86 = vunpack.c.l.b16 %v53
    %v87 = vunpack.c.l.b16 %v54
    %v88 = vunpack.c.l.b16 %v55
    %v89 = vunpack.c.l.b16 %v56
    %v90 = vunpack.c.l.b16 %v57
    %v91 = vunpack.c.l.b16 %v58
    %v92 = vunpack.c.l.b16 %v59
    %v93 = vunpack.c.l.b16 %v60
    %v94 = vunpack.c.l.b16 %v61
    %v95 = vunpack.c.l.b16 %v62
    %v96 = vunpack.c.l.b16 %v63
    %v97 = vunpack.c.l.b16 %v64
    %v98 = vunpack.c.l.b16 %v65
    %v99 = vpack.c.b16 %v84, %v83
    %v100 = vpack.c.b16 %v86, %v85
    %v101 = vpack.c.b16 %v88, %v87
    %v102 = vpack.c.b16 %v90, %v89
    %v103 = vpack.c.b16 %v92, %v91
    %v104 = vpack.c.b16 %v94, %v93
    %v105 = vpack.c.b16 %v96, %v95
    %v106 = vpack.c.b16 %v98, %v97
    %115 = vmatpush.bf16.msra.mxu0 %v106
    %116 = vmatpush.bf16.msra.mxu0 %v105
    %117 = vmatpush.bf16.msra.mxu0 %v104
    %118 = vmatpush.bf16.msra.mxu0 %v103
    %119 = vmatpush.bf16.msra.mxu0 %v102
    %120 = vmatpush.bf16.msra.mxu0 %v101
    %121 = vmatpush.bf16.msra.mxu0 %v100
    %122 = vmatpush.bf16.msra.mxu0 %v99
    %123 = vmatmul.bf16.gmra.mxu0 %v49
    %v124 = vpop.f32.mrf.mxu0
    %v125 = vadd.f32 %v66, %v124
    %v126 = vpop.f32.mrf.mxu0
    %127 = vdwg.mxu0
    %v128 = vmax.f32 %v125, 0.0
    %v129 = vpack.c.bf16 %v128, %v128
    %s130 = scalar_lea.vmem [#allocation5], 64
    %v131 = vld [vmem:[%s130] sm:$0xf]
    %v132 = vld [vmem:[%s130 + $0x4] sm:$0xf]
    %v133 = vld [vmem:[%s130 + $0x8] sm:$0xf]
    %v134 = vld [vmem:[%s130 + $0xc] sm:$0xf]
    %v135 = vld [vmem:[%s130 + $0x10] sm:$0xf]
    %v136 = vld [vmem:[%s130 + $0x14] sm:$0xf]
    %v137 = vld [vmem:[%s130 + $0x18] sm:$0xf]
    %v138 = vld [vmem:[%s130 + $0x1c] sm:$0xf]
    %v139 = vld [vmem:[%s130 + $0x20] sm:$0xf]
    %v140 = vld [vmem:[%s130 + $0x24] sm:$0xf]
    %v141 = vld [vmem:[%s130 + $0x28] sm:$0xf]
    %v142 = vld [vmem:[%s130 + $0x2c] sm:$0xf]
    %v143 = vld [vmem:[%s130 + $0x30] sm:$0xf]
    %v144 = vld [vmem:[%s130 + $0x34] sm:$0xf]
    %v145 = vld [vmem:[%s130 + $0x38] sm:$0xf]
    %v146 = vld [vmem:[%s130 + $0x3c] sm:$0xf]
    %v147 = vperm.slane %v46, 1
    %v164 = vunpack.c.l.b16 %v131
    %v165 = vunpack.c.l.b16 %v132
    %v166 = vunpack.c.l.b16 %v133
    %v167 = vunpack.c.l.b16 %v134
    %v168 = vunpack.c.l.b16 %v135
    %v169 = vunpack.c.l.b16 %v136
    %v170 = vunpack.c.l.b16 %v137
    %v171 = vunpack.c.l.b16 %v138
    %v172 = vunpack.c.l.b16 %v139
    %v173 = vunpack.c.l.b16 %v140
    %v174 = vunpack.c.l.b16 %v141
    %v175 = vunpack.c.l.b16 %v142
    %v176 = vunpack.c.l.b16 %v143
    %v177 = vunpack.c.l.b16 %v144
    %v178 = vunpack.c.l.b16 %v145
    %v179 = vunpack.c.l.b16 %v146
    %v180 = vpack.c.b16 %v165, %v164
    %v181 = vpack.c.b16 %v167, %v166
    %v182 = vpack.c.b16 %v169, %v168
    %v183 = vpack.c.b16 %v171, %v170
    %v184 = vpack.c.b16 %v173, %v172
    %v185 = vpack.c.b16 %v175, %v174
    %v186 = vpack.c.b16 %v177, %v176
    %v187 = vpack.c.b16 %v179, %v178
    %196 = vmatpush.bf16.msra.mxu0 %v187
    %197 = vmatpush.bf16.msra.mxu0 %v186
    %198 = vmatpush.bf16.msra.mxu0 %v185
    %199 = vmatpush.bf16.msra.mxu0 %v184
    %200 = vmatpush.bf16.msra.mxu0 %v183
    %201 = vmatpush.bf16.msra.mxu0 %v182
    %202 = vmatpush.bf16.msra.mxu0 %v181
    %203 = vmatpush.bf16.msra.mxu0 %v180
    %204 = vmatmul.bf16.gmra.mxu0 %v129
    %v205 = vpop.f32.mrf.mxu0
    %v206 = vadd.f32 %v147, %v205
    %v207 = vpop.f32.mrf.mxu0
    %208 = vdwg.mxu0
    %v209 = vmax.f32 %v206, 0.0
    %v210 = vpack.c.bf16 %v209, %v209
    %s211 = scalar_lea.vmem [#allocation5], 128
    %v212 = vld [vmem:[%s211] sm:$0xf]
    %v213 = vld [vmem:[%s211 + $0x4] sm:$0xf]
    %v214 = vld [vmem:[%s211 + $0x8] sm:$0xf]
    %v215 = vld [vmem:[%s211 + $0xc] sm:$0xf]
    %v216 = vld [vmem:[%s211 + $0x10] sm:$0xf]
    %v217 = vld [vmem:[%s211 + $0x14] sm:$0xf]
    %v218 = vld [vmem:[%s211 + $0x18] sm:$0xf]
    %v219 = vld [vmem:[%s211 + $0x1c] sm:$0xf]
    %v220 = vld [vmem:[%s211 + $0x20] sm:$0xf]
    %v221 = vld [vmem:[%s211 + $0x24] sm:$0xf]
    %v222 = vld [vmem:[%s211 + $0x28] sm:$0xf]
    %v223 = vld [vmem:[%s211 + $0x2c] sm:$0xf]
    %v224 = vld [vmem:[%s211 + $0x30] sm:$0xf]
    %v225 = vld [vmem:[%s211 + $0x34] sm:$0xf]
    %v226 = vld [vmem:[%s211 + $0x38] sm:$0xf]
    %v227 = vld [vmem:[%s211 + $0x3c] sm:$0xf]
    %v228 = vperm.slane %v46, 2
    %v245 = vunpack.c.l.b16 %v212
    %v246 = vunpack.c.l.b16 %v213
    %v247 = vunpack.c.l.b16 %v214
    %v248 = vunpack.c.l.b16 %v215
    %v249 = vunpack.c.l.b16 %v216
    %v250 = vunpack.c.l.b16 %v217
    %v251 = vunpack.c.l.b16 %v218
    %v252 = vunpack.c.l.b16 %v219
    %v253 = vunpack.c.l.b16 %v220
    %v254 = vunpack.c.l.b16 %v221
    %v255 = vunpack.c.l.b16 %v222
    %v256 = vunpack.c.l.b16 %v223
    %v257 = vunpack.c.l.b16 %v224
    %v258 = vunpack.c.l.b16 %v225
    %v259 = vunpack.c.l.b16 %v226
    %v260 = vunpack.c.l.b16 %v227
    %v261 = vpack.c.b16 %v246, %v245
    %v262 = vpack.c.b16 %v248, %v247
    %v263 = vpack.c.b16 %v250, %v249
    %v264 = vpack.c.b16 %v252, %v251
    %v265 = vpack.c.b16 %v254, %v253
    %v266 = vpack.c.b16 %v256, %v255
    %v267 = vpack.c.b16 %v258, %v257
    %v268 = vpack.c.b16 %v260, %v259
    %277 = vmatpush.bf16.msra.mxu0 %v268
    %278 = vmatpush.bf16.msra.mxu0 %v267
    %279 = vmatpush.bf16.msra.mxu0 %v266
    %280 = vmatpush.bf16.msra.mxu0 %v265
    %281 = vmatpush.bf16.msra.mxu0 %v264
    %282 = vmatpush.bf16.msra.mxu0 %v263
    %283 = vmatpush.bf16.msra.mxu0 %v262
    %284 = vmatpush.bf16.msra.mxu0 %v261
    %285 = vmatmul.bf16.gmra.mxu0 %v210
    %v286 = vpop.f32.mrf.mxu0
    %v287 = vadd.f32 %v228, %v286
    %v288 = vpop.f32.mrf.mxu0
    %289 = vdwg.mxu0
    %v290 = vtanh.pop %v287
    %v291 = vlaneseq
    %v292 = vand.u32 %v291, 127
    %vm293 = vcmp.eq.s32.totalorder %v292, 8
    %s294 = sld [smem:[#allocation2]]
    %v295 = vstv %s294
    %v296 = vsel %vm293, %v295, 0.0
    %v297 = vadd.f32 %v290, %v296
    %vm298 = vcmp.eq.s32.totalorder %v292, 9
    %s299 = sld [smem:[#allocation2 + $0x1]]
    %v300 = vstv %s299
    %v301 = vsel %vm298, %v300, 0.0
    %v302 = vadd.f32 %v297, %v301
    %v303 = vpack.c.bf16 %v302, %v302
    %s304 = scalar_lea.vmem [#allocation5], 192
    %v305 = vld [vmem:[%s304] sm:$0xf]
    %v306 = vld [vmem:[%s304 + $0x4] sm:$0xf]
    %v307 = vld [vmem:[%s304 + $0x8] sm:$0xf]
    %v308 = vld [vmem:[%s304 + $0xc] sm:$0xf]
    %v309 = vld [vmem:[%s304 + $0x10] sm:$0xf]
    %v310 = vld [vmem:[%s304 + $0x14] sm:$0xf]
    %v311 = vld [vmem:[%s304 + $0x18] sm:$0xf]
    %v312 = vld [vmem:[%s304 + $0x1c] sm:$0xf]
    %v313 = vld [vmem:[%s304 + $0x20] sm:$0xf]
    %v314 = vld [vmem:[%s304 + $0x24] sm:$0xf]
    %v315 = vld [vmem:[%s304 + $0x28] sm:$0xf]
    %v316 = vld [vmem:[%s304 + $0x2c] sm:$0xf]
    %v317 = vld [vmem:[%s304 + $0x30] sm:$0xf]
    %v318 = vld [vmem:[%s304 + $0x34] sm:$0xf]
    %v319 = vld [vmem:[%s304 + $0x38] sm:$0xf]
    %v320 = vld [vmem:[%s304 + $0x3c] sm:$0xf]
    %v321 = vperm.slane %v46, 3
    %v338 = vunpack.c.l.b16 %v305
    %v339 = vunpack.c.l.b16 %v306
    %v340 = vunpack.c.l.b16 %v307
    %v341 = vunpack.c.l.b16 %v308
    %v342 = vunpack.c.l.b16 %v309
    %v343 = vunpack.c.l.b16 %v310
    %v344 = vunpack.c.l.b16 %v311
    %v345 = vunpack.c.l.b16 %v312
    %v346 = vunpack.c.l.b16 %v313
    %v347 = vunpack.c.l.b16 %v314
    %v348 = vunpack.c.l.b16 %v315
    %v349 = vunpack.c.l.b16 %v316
    %v350 = vunpack.c.l.b16 %v317
    %v351 = vunpack.c.l.b16 %v318
    %v352 = vunpack.c.l.b16 %v319
    %v353 = vunpack.c.l.b16 %v320
    %v354 = vpack.c.b16 %v339, %v338
    %v355 = vpack.c.b16 %v341, %v340
    %v356 = vpack.c.b16 %v343, %v342
    %v357 = vpack.c.b16 %v345, %v344
    %v358 = vpack.c.b16 %v347, %v346
    %v359 = vpack.c.b16 %v349, %v348
    %v360 = vpack.c.b16 %v351, %v350
    %v361 = vpack.c.b16 %v353, %v352
    %370 = vmatpush.bf16.msra.mxu0 %v361
    %371 = vmatpush.bf16.msra.mxu0 %v360
    %372 = vmatpush.bf16.msra.mxu0 %v359
    %373 = vmatpush.bf16.msra.mxu0 %v358
    %374 = vmatpush.bf16.msra.mxu0 %v357
    %375 = vmatpush.bf16.msra.mxu0 %v356
    %376 = vmatpush.bf16.msra.mxu0 %v355
    %377 = vmatpush.bf16.msra.mxu0 %v354
    %378 = vmatmul.bf16.gmra.mxu0 %v303
    %v379 = vpop.f32.mrf.mxu0
    %v380 = vadd.f32 %v321, %v379
    %v381 = vpop.f32.mrf.mxu0
    %382 = vdwg.mxu0
    %v383 = vmax.f32 %v380, 0.0
    %v384 = vpack.c.bf16 %v383, %v383
    %s385 = scalar_lea.vmem [#allocation5], 256
    %v386 = vld [vmem:[%s385] sm:$0xf]
    %v387 = vld [vmem:[%s385 + $0x4] sm:$0xf]
    %v388 = vld [vmem:[%s385 + $0x8] sm:$0xf]
    %v389 = vld [vmem:[%s385 + $0xc] sm:$0xf]
    %v390 = vld [vmem:[%s385 + $0x10] sm:$0xf]
    %v391 = vld [vmem:[%s385 + $0x14] sm:$0xf]
    %v392 = vld [vmem:[%s385 + $0x18] sm:$0xf]
    %v393 = vld [vmem:[%s385 + $0x1c] sm:$0xf]
    %v394 = vld [vmem:[%s385 + $0x20] sm:$0xf]
    %v395 = vld [vmem:[%s385 + $0x24] sm:$0xf]
    %v396 = vld [vmem:[%s385 + $0x28] sm:$0xf]
    %v397 = vld [vmem:[%s385 + $0x2c] sm:$0xf]
    %v398 = vld [vmem:[%s385 + $0x30] sm:$0xf]
    %v399 = vld [vmem:[%s385 + $0x34] sm:$0xf]
    %v400 = vld [vmem:[%s385 + $0x38] sm:$0xf]
    %v401 = vld [vmem:[%s385 + $0x3c] sm:$0xf]
    %v402 = vperm.slane %v46, 4
    %v419 = vunpack.c.l.b16 %v386
    %v420 = vunpack.c.l.b16 %v387
    %v421 = vunpack.c.l.b16 %v388
    %v422 = vunpack.c.l.b16 %v389
    %v423 = vunpack.c.l.b16 %v390
    %v424 = vunpack.c.l.b16 %v391
    %v425 = vunpack.c.l.b16 %v392
    %v426 = vunpack.c.l.b16 %v393
    %v427 = vunpack.c.l.b16 %v394
    %v428 = vunpack.c.l.b16 %v395
    %v429 = vunpack.c.l.b16 %v396
    %v430 = vunpack.c.l.b16 %v397
    %v431 = vunpack.c.l.b16 %v398
    %v432 = vunpack.c.l.b16 %v399
    %v433 = vunpack.c.l.b16 %v400
    %v434 = vunpack.c.l.b16 %v401
    %v435 = vpack.c.b16 %v420, %v419
    %v436 = vpack.c.b16 %v422, %v421
    %v437 = vpack.c.b16 %v424, %v423
    %v438 = vpack.c.b16 %v426, %v425
    %v439 = vpack.c.b16 %v428, %v427
    %v440 = vpack.c.b16 %v430, %v429
    %v441 = vpack.c.b16 %v432, %v431
    %v442 = vpack.c.b16 %v434, %v433
    %451 = vmatpush.bf16.msra.mxu0 %v442
    %452 = vmatpush.bf16.msra.mxu0 %v441
    %453 = vmatpush.bf16.msra.mxu0 %v440
    %454 = vmatpush.bf16.msra.mxu0 %v439
    %455 = vmatpush.bf16.msra.mxu0 %v438
    %456 = vmatpush.bf16.msra.mxu0 %v437
    %457 = vmatpush.bf16.msra.mxu0 %v436
    %458 = vmatpush.bf16.msra.mxu0 %v435
    %459 = vmatmul.bf16.gmra.mxu0 %v384
    %v460 = vpop.f32.mrf.mxu0
    %v461 = vadd.f32 %v402, %v460
    %v462 = vpop.f32.mrf.mxu0
    %463 = vdwg.mxu0
    %v464 = vmax.f32 %v461, 0.0
    %v465 = vpack.c.bf16 %v464, %v464
    %s466 = scalar_lea.vmem [#allocation5], 320
    %v467 = vld [vmem:[%s466] sm:$0xf]
    %v468 = vld [vmem:[%s466 + $0x4] sm:$0xf]
    %v469 = vld [vmem:[%s466 + $0x8] sm:$0xf]
    %v470 = vld [vmem:[%s466 + $0xc] sm:$0xf]
    %v471 = vld [vmem:[%s466 + $0x10] sm:$0xf]
    %v472 = vld [vmem:[%s466 + $0x14] sm:$0xf]
    %v473 = vld [vmem:[%s466 + $0x18] sm:$0xf]
    %v474 = vld [vmem:[%s466 + $0x1c] sm:$0xf]
    %v475 = vld [vmem:[%s466 + $0x20] sm:$0xf]
    %v476 = vld [vmem:[%s466 + $0x24] sm:$0xf]
    %v477 = vld [vmem:[%s466 + $0x28] sm:$0xf]
    %v478 = vld [vmem:[%s466 + $0x2c] sm:$0xf]
    %v479 = vld [vmem:[%s466 + $0x30] sm:$0xf]
    %v480 = vld [vmem:[%s466 + $0x34] sm:$0xf]
    %v481 = vld [vmem:[%s466 + $0x38] sm:$0xf]
    %v482 = vld [vmem:[%s466 + $0x3c] sm:$0xf]
    %v483 = vperm.slane %v46, 5
    %v500 = vunpack.c.l.b16 %v467
    %v501 = vunpack.c.l.b16 %v468
    %v502 = vunpack.c.l.b16 %v469
    %v503 = vunpack.c.l.b16 %v470
    %v504 = vunpack.c.l.b16 %v471
    %v505 = vunpack.c.l.b16 %v472
    %v506 = vunpack.c.l.b16 %v473
    %v507 = vunpack.c.l.b16 %v474
    %v508 = vunpack.c.l.b16 %v475
    %v509 = vunpack.c.l.b16 %v476
    %v510 = vunpack.c.l.b16 %v477
    %v511 = vunpack.c.l.b16 %v478
    %v512 = vunpack.c.l.b16 %v479
    %v513 = vunpack.c.l.b16 %v480
    %v514 = vunpack.c.l.b16 %v481
    %v515 = vunpack.c.l.b16 %v482
    %v516 = vpack.c.b16 %v501, %v500
    %v517 = vpack.c.b16 %v503, %v502
    %v518 = vpack.c.b16 %v505, %v504
    %v519 = vpack.c.b16 %v507, %v506
    %v520 = vpack.c.b16 %v509, %v508
    %v521 = vpack.c.b16 %v511, %v510
    %v522 = vpack.c.b16 %v513, %v512
    %v523 = vpack.c.b16 %v515, %v514
    %532 = vmatpush.bf16.msra.mxu0 %v523
    %533 = vmatpush.bf16.msra.mxu0 %v522
    %534 = vmatpush.bf16.msra.mxu0 %v521
    %535 = vmatpush.bf16.msra.mxu0 %v520
    %536 = vmatpush.bf16.msra.mxu0 %v519
    %537 = vmatpush.bf16.msra.mxu0 %v518
    %538 = vmatpush.bf16.msra.mxu0 %v517
    %539 = vmatpush.bf16.msra.mxu0 %v516
    %540 = vmatmul.bf16.gmra.mxu0 %v465
    %v541 = vpop.f32.mrf.mxu0
    %v542 = vadd.f32 %v483, %v541
    %v543 = vpop.f32.mrf.mxu0
    %544 = vdwg.mxu0
    %v545 = vmax.f32 %v542, 0.0
    %v546 = vpack.c.bf16 %v545, %v545
    %s547 = scalar_lea.vmem [#allocation5], 384
    %v548 = vld [vmem:[%s547] sm:$0xf]
    %v549 = vld [vmem:[%s547 + $0x4] sm:$0xf]
    %v550 = vld [vmem:[%s547 + $0x8] sm:$0xf]
    %v551 = vld [vmem:[%s547 + $0xc] sm:$0xf]
    %v552 = vld [vmem:[%s547 + $0x10] sm:$0xf]
    %v553 = vld [vmem:[%s547 + $0x14] sm:$0xf]
    %v554 = vld [vmem:[%s547 + $0x18] sm:$0xf]
    %v555 = vld [vmem:[%s547 + $0x1c] sm:$0xf]
    %v556 = vld [vmem:[%s547 + $0x20] sm:$0xf]
    %v557 = vld [vmem:[%s547 + $0x24] sm:$0xf]
    %v558 = vld [vmem:[%s547 + $0x28] sm:$0xf]
    %v559 = vld [vmem:[%s547 + $0x2c] sm:$0xf]
    %v560 = vld [vmem:[%s547 + $0x30] sm:$0xf]
    %v561 = vld [vmem:[%s547 + $0x34] sm:$0xf]
    %v562 = vld [vmem:[%s547 + $0x38] sm:$0xf]
    %v563 = vld [vmem:[%s547 + $0x3c] sm:$0xf]
    %v564 = vperm.slane %v46, 6
    %v581 = vunpack.c.l.b16 %v548
    %v582 = vunpack.c.l.b16 %v549
    %v583 = vunpack.c.l.b16 %v550
    %v584 = vunpack.c.l.b16 %v551
    %v585 = vunpack.c.l.b16 %v552
    %v586 = vunpack.c.l.b16 %v553
    %v587 = vunpack.c.l.b16 %v554
    %v588 = vunpack.c.l.b16 %v555
    %v589 = vunpack.c.l.b16 %v556
    %v590 = vunpack.c.l.b16 %v557
    %v591 = vunpack.c.l.b16 %v558
    %v592 = vunpack.c.l.b16 %v559
    %v593 = vunpack.c.l.b16 %v560
    %v594 = vunpack.c.l.b16 %v561
    %v595 = vunpack.c.l.b16 %v562
    %v596 = vunpack.c.l.b16 %v563
    %v597 = vpack.c.b16 %v582, %v581
    %v598 = vpack.c.b16 %v584, %v583
    %v599 = vpack.c.b16 %v586, %v585
    %v600 = vpack.c.b16 %v588, %v587
    %v601 = vpack.c.b16 %v590, %v589
    %v602 = vpack.c.b16 %v592, %v591
    %v603 = vpack.c.b16 %v594, %v593
    %v604 = vpack.c.b16 %v596, %v595
    %613 = vmatpush.bf16.msra.mxu0 %v604
    %614 = vmatpush.bf16.msra.mxu0 %v603
    %615 = vmatpush.bf16.msra.mxu0 %v602
    %616 = vmatpush.bf16.msra.mxu0 %v601
    %617 = vmatpush.bf16.msra.mxu0 %v600
    %618 = vmatpush.bf16.msra.mxu0 %v599
    %619 = vmatpush.bf16.msra.mxu0 %v598
    %620 = vmatpush.bf16.msra.mxu0 %v597
    %621 = vmatmul.bf16.gmra.mxu0 %v546
    %v622 = vpop.f32.mrf.mxu0
    %v623 = vadd.f32 %v564, %v622
    %v624 = vpop.f32.mrf.mxu0
    %625 = vdwg.mxu0
    %v626 = vmax.f32 %v623, 0.0
    %v627 = vpack.c.bf16 %v626, %v626
    %s628 = scalar_lea.vmem [#allocation5], 448
    %v629 = vld [vmem:[%s628] sm:$0xf]
    %v630 = vld [vmem:[%s628 + $0x4] sm:$0xf]
    %v631 = vld [vmem:[%s628 + $0x8] sm:$0xf]
    %v632 = vld [vmem:[%s628 + $0xc] sm:$0xf]
    %v633 = vld [vmem:[%s628 + $0x10] sm:$0xf]
    %v634 = vld [vmem:[%s628 + $0x14] sm:$0xf]
    %v635 = vld [vmem:[%s628 + $0x18] sm:$0xf]
    %v636 = vld [vmem:[%s628 + $0x1c] sm:$0xf]
    %v637 = vld [vmem:[%s628 + $0x20] sm:$0xf]
    %v638 = vld [vmem:[%s628 + $0x24] sm:$0xf]
    %v639 = vld [vmem:[%s628 + $0x28] sm:$0xf]
    %v640 = vld [vmem:[%s628 + $0x2c] sm:$0xf]
    %v641 = vld [vmem:[%s628 + $0x30] sm:$0xf]
    %v642 = vld [vmem:[%s628 + $0x34] sm:$0xf]
    %v643 = vld [vmem:[%s628 + $0x38] sm:$0xf]
    %v644 = vld [vmem:[%s628 + $0x3c] sm:$0xf]
    %v645 = vperm.slane %v46, 7
    %v662 = vunpack.c.l.b16 %v629
    %v663 = vunpack.c.l.b16 %v630
    %v664 = vunpack.c.l.b16 %v631
    %v665 = vunpack.c.l.b16 %v632
    %v666 = vunpack.c.l.b16 %v633
    %v667 = vunpack.c.l.b16 %v634
    %v668 = vunpack.c.l.b16 %v635
    %v669 = vunpack.c.l.b16 %v636
    %v670 = vunpack.c.l.b16 %v637
    %v671 = vunpack.c.l.b16 %v638
    %v672 = vunpack.c.l.b16 %v639
    %v673 = vunpack.c.l.b16 %v640
    %v674 = vunpack.c.l.b16 %v641
    %v675 = vunpack.c.l.b16 %v642
    %v676 = vunpack.c.l.b16 %v643
    %v677 = vunpack.c.l.b16 %v644
    %v678 = vpack.c.b16 %v663, %v662
    %v679 = vpack.c.b16 %v665, %v664
    %v680 = vpack.c.b16 %v667, %v666
    %v681 = vpack.c.b16 %v669, %v668
    %v682 = vpack.c.b16 %v671, %v670
    %v683 = vpack.c.b16 %v673, %v672
    %v684 = vpack.c.b16 %v675, %v674
    %v685 = vpack.c.b16 %v677, %v676
    %694 = vmatpush.bf16.msra.mxu0 %v685
    %695 = vmatpush.bf16.msra.mxu0 %v684
    %696 = vmatpush.bf16.msra.mxu0 %v683
    %697 = vmatpush.bf16.msra.mxu0 %v682
    %698 = vmatpush.bf16.msra.mxu0 %v681
    %699 = vmatpush.bf16.msra.mxu0 %v680
    %700 = vmatpush.bf16.msra.mxu0 %v679
    %701 = vmatpush.bf16.msra.mxu0 %v678
    %702 = vmatmul.bf16.gmra.mxu0 %v627
    %v703 = vpop.f32.mrf.mxu0
    %v704 = vadd.f32 %v645, %v703
    %v705 = vpop.f32.mrf.mxu0
    %706 = vdwg.mxu0
    %v707 = vmax.f32 %v704, 0.0
    %v708 = vpack.c.bf16 %v707, %v707
    %s709 = scalar_lea.vmem [#allocation5], 512
    %v710 = vld [vmem:[%s709] sm:$0xf]
    %v711 = vld [vmem:[%s709 + $0x4] sm:$0xf]
    %v712 = vld [vmem:[%s709 + $0x8] sm:$0xf]
    %v713 = vld [vmem:[%s709 + $0xc] sm:$0xf]
    %v714 = vld [vmem:[%s709 + $0x10] sm:$0xf]
    %v715 = vld [vmem:[%s709 + $0x14] sm:$0xf]
    %v716 = vld [vmem:[%s709 + $0x18] sm:$0xf]
    %v717 = vld [vmem:[%s709 + $0x1c] sm:$0xf]
    %v718 = vld [vmem:[%s709 + $0x20] sm:$0xf]
    %v719 = vld [vmem:[%s709 + $0x24] sm:$0xf]
    %v720 = vld [vmem:[%s709 + $0x28] sm:$0xf]
    %v721 = vld [vmem:[%s709 + $0x2c] sm:$0xf]
    %v722 = vld [vmem:[%s709 + $0x30] sm:$0xf]
    %v723 = vld [vmem:[%s709 + $0x34] sm:$0xf]
    %v724 = vld [vmem:[%s709 + $0x38] sm:$0xf]
    %v725 = vld [vmem:[%s709 + $0x3c] sm:$0xf]
    %v726 = vperm.slane %v47, 0
    %v743 = vunpack.c.l.b16 %v710
    %v744 = vunpack.c.l.b16 %v711
    %v745 = vunpack.c.l.b16 %v712
    %v746 = vunpack.c.l.b16 %v713
    %v747 = vunpack.c.l.b16 %v714
    %v748 = vunpack.c.l.b16 %v715
    %v749 = vunpack.c.l.b16 %v716
    %v750 = vunpack.c.l.b16 %v717
    %v751 = vunpack.c.l.b16 %v718
    %v752 = vunpack.c.l.b16 %v719
    %v753 = vunpack.c.l.b16 %v720
    %v754 = vunpack.c.l.b16 %v721
    %v755 = vunpack.c.l.b16 %v722
    %v756 = vunpack.c.l.b16 %v723
    %v757 = vunpack.c.l.b16 %v724
    %v758 = vunpack.c.l.b16 %v725
    %v759 = vpack.c.b16 %v744, %v743
    %v760 = vpack.c.b16 %v746, %v745
    %v761 = vpack.c.b16 %v748, %v747
    %v762 = vpack.c.b16 %v750, %v749
    %v763 = vpack.c.b16 %v752, %v751
    %v764 = vpack.c.b16 %v754, %v753
    %v765 = vpack.c.b16 %v756, %v755
    %v766 = vpack.c.b16 %v758, %v757
    %775 = vmatpush.bf16.msra.mxu0 %v766
    %776 = vmatpush.bf16.msra.mxu0 %v765
    %777 = vmatpush.bf16.msra.mxu0 %v764
    %778 = vmatpush.bf16.msra.mxu0 %v763
    %779 = vmatpush.bf16.msra.mxu0 %v762
    %780 = vmatpush.bf16.msra.mxu0 %v761
    %781 = vmatpush.bf16.msra.mxu0 %v760
    %782 = vmatpush.bf16.msra.mxu0 %v759
    %783 = vmatmul.bf16.gmra.mxu0 %v708
    %v784 = vpop.f32.mrf.mxu0
    %v785 = vadd.f32 %v726, %v784
    %v786 = vpop.f32.mrf.mxu0
    %787 = vdwg.mxu0
    %v788 = vtanh.pop %v785
    %789 = vst [vmem:[%s4] sm:$0xff] %v788
    // Predicated region
    $region26: #{_forward_impl.1} parent=1 // pred_check
      _
    $region27: #{_forward_impl.1} parent=1 // pred_check_branch
      %791 = sbr.rel (0) target = $region29
    $region28: #{_forward_impl.1} parent=1 // pred_region
      _
    $region29: #{_forward_impl.1} parent=1 // pred_fallthru
      _
    // Predicated region
    $region30: #{_forward_impl.1} parent=1 // pred_check
      _
    $region31: #{_forward_impl.1} parent=1 // pred_check_branch
      %793 = sbr.rel (0) target = $region33
    $region32: #{_forward_impl.1} parent=1 // pred_region
      _
    $region33: #{_forward_impl.1} parent=1 // pred_fallthru
      _
    %794 = vsyncpa [#allocation3], 1
    %795 = vsyncpa [#allocation4], 1

</llo_original>
